<compile_context>
chip_gen: v6e
topology: v6e:2x2x1
jax: 0.10.0
libtpu: 0.0.40
codegen_flags: <defaults>
</compile_context>

<pallas_src>
import functools

import jax
import jax.numpy as jnp
import numpy as np
from jax.experimental import pallas as pl
from jax.experimental.pallas import tpu as pltpu


# ----------------------------------------------------------------------------
# Pallas kernel
# ----------------------------------------------------------------------------
def _make_ffnn_kernel(n_layers):
    """Fused FFNN forward; activations kept (features, batch_tile).

    Ref order (positional):
      x, y                       # (batch_tile, in_x), (batch_tile, in_y)
      W0, b0, Wy, by             # layer-0 branches, native (out, in) / (out, 1)
      W1a, W1b, b1               # wxs[1] split on its input: [:, :u0], [:, u0:]
      W2, b2, ..., Wn, bn        # remaining layers, native (out, in) / (out, 1)
      out                        # (1, batch_tile)  lane-dense
    """
    # Contract the feature axis (dim 1) of the (out, in) weight with the
    # feature axis (dim 1) of the batch-major block -> (out, batch_tile).
    feat_dn = (((1,), (1,)), ((), ()))

    def kernel(*refs):
        x_ref, y_ref = refs[0], refs[1]
        out_ref = refs[-1]
        w0 = refs[2][...]
        b0 = refs[3][...]
        wy = refs[4][...]
        by = refs[5][...]
        w1a = refs[6][...]
        w1b = refs[7][...]
        b1 = refs[8][...]

        cdt = w0.dtype  # compute dtype (f32 or bf16); accumulation is f32

        # ---- layer 0: two parallel linears, result (u0, batch_tile) --------
        zx = jax.lax.dot_general(w0, x_ref[...].astype(cdt), feat_dn,
                                 preferred_element_type=jnp.float32) + b0
        zy = jax.lax.dot_general(wy, y_ref[...].astype(cdt), feat_dn,
                                 preferred_element_type=jnp.float32) + by
        # (no activation between the concat and wxs[1], matching the module)

        # ---- layer 1 applied to the two concat halves (no in-kernel concat) -
        z = (jnp.dot(w1a, zx.astype(cdt), preferred_element_type=jnp.float32)
             + jnp.dot(w1b, zy.astype(cdt), preferred_element_type=jnp.float32)
             + b1)
        if n_layers != 1:
            z = jnp.maximum(z, 0.2 * z)          # LeakyReLU(0.2)

        # ---- layers 2..n_layers ---------------------------------------------
        for i in range(2, n_layers + 1):
            w = refs[9 + 2 * (i - 2)][...]
            b = refs[10 + 2 * (i - 2)][...]
            z = jnp.dot(w, z.astype(w.dtype),
                        preferred_element_type=jnp.float32) + b
            if i != n_layers:
                z = jnp.maximum(z, 0.2 * z)      # LeakyReLU(0.2)

        out_ref[...] = z.astype(out_ref.dtype)   # (1, batch_tile), lane-dense

    return kernel


# ----------------------------------------------------------------------------
# One-time parameter preparation (hoisted out of the hot path)
# ----------------------------------------------------------------------------
def prepare_ffnn_params(wxs, wy, compute_dtype=jnp.float32):
    """Flat kernel parameter list [W0, b0, Wy, by, W1a, W1b, b1, W2, b2, ...].

    wxs: list of (W, b) in PyTorch nn.Linear layout W:(out, in), b:(out,)
         for wxs[0..n_layers];  wy: (W, b) for the label branch.
    Weights are cast to compute_dtype (f32, or bf16 on ANY TPU generation —
    the MXU is bf16-native on v5e as well); biases stay f32 (added post-MXU).
    wxs[1] is split on its input dim so the kernel needs no concatenate:
        W1 @ concat(zx, zy) == W1[:, :u0] @ zx + W1[:, u0:] @ zy.
    """
    (W0, b0) = wxs[0]
    (Wy, by) = wy
    u0 = W0.shape[0]
    assert Wy.shape[0] == u0, "wxs[0] and wy must share output width units[0]"
    W1, b1 = wxs[1]
    assert W1.shape[1] == 2 * u0, "wxs[1] must take the concatenated width"

    def w(a):
        return jnp.asarray(a, compute_dtype)

    def bias(a):
        return jnp.asarray(a, jnp.float32).reshape(-1, 1)

    params = [w(W0), bias(b0), w(Wy), bias(by),
              w(W1[:, :u0]), w(W1[:, u0:]), bias(b1)]
    for W, b in wxs[2:]:
        params.extend([w(W), bias(b)])
    return params


# ----------------------------------------------------------------------------
# Batch-tile selection (256-lane granularity; >=2 tiles for v7x when possible)
# ----------------------------------------------------------------------------
_LANE_UNIT = 256  # multiple of 256 fills v6e/v7x MXU column blocks; >=128 ok on v5e


def _select_batch_tile(batch, requested):
    req = max(_LANE_UNIT, (int(requested) // _LANE_UNIT) * _LANE_UNIT)
    min_padded = -(-batch // _LANE_UNIT) * _LANE_UNIT
    tile = min(req, min_padded)
    # keep >= 2 grid steps whenever the batch allows it, so the "parallel"
    # grid axis can shard across both v7x TensorCores
    half = (min_padded // (2 * _LANE_UNIT)) * _LANE_UNIT
    if half >= _LANE_UNIT:
        tile = min(tile, half)
    return tile


# ----------------------------------------------------------------------------
# Wrapper (pallas_call plumbing)
# ----------------------------------------------------------------------------
def ffnn_forward(x, y, params, *, batch_tile=2048):
    """x: (B, input_dim); y: (B, input_dim_label) or (input_dim_label,).

    params: output of prepare_ffnn_params().  Returns (B, 1) float32.
    """
    x = jnp.asarray(x)
    y = jnp.asarray(y)
    if y.ndim == 1:                               # module's y.repeat(B, 1) branch
        y = jnp.broadcast_to(y[None, :], (x.shape[0], y.shape[0]))

    assert len(params) >= 7 and (len(params) - 5) % 2 == 0
    n_layers = (len(params) - 5) // 2
    B, in_x = x.shape
    in_y = y.shape[1]

    tile = _select_batch_tile(B, batch_tile)
    num_tiles = -(-B // tile)
    padded_B = num_tiles * tile
    if padded_B != B:                             # only pad when strictly needed
        x = jnp.pad(x, ((0, padded_B - B), (0, 0)))
        y = jnp.pad(y, ((0, padded_B - B), (0, 0)))

    in_specs = [
        pl.BlockSpec((tile, in_x), lambda i: (i, 0)),
        pl.BlockSpec((tile, in_y), lambda i: (i, 0)),
    ]
    # Weights / biases are grid-invariant: full-array blocks, constant index
    # map (DMA'd once, not re-streamed per grid step).
    for p in params:
        in_specs.append(pl.BlockSpec(p.shape, lambda i: (0, 0)))

    out = pl.pallas_call(
        _make_ffnn_kernel(n_layers),
        out_shape=jax.ShapeDtypeStruct((1, padded_B), jnp.float32),
        grid_spec=pltpu.PrefetchScalarGridSpec(
            num_scalar_prefetch=0,
            grid=(num_tiles,),
            in_specs=in_specs,
            out_specs=pl.BlockSpec((1, tile), lambda i: (0, i)),
        ),
        compiler_params=pltpu.CompilerParams(
            dimension_semantics=("parallel",)),
    )(x, y, *params)

    return out[0, :B].reshape(B, 1)


# ----------------------------------------------------------------------------
# Pure-JAX reference (for correctness check)
# ----------------------------------------------------------------------------
def ffnn_reference(x, y, wxs, wy):
    n_layers = len(wxs) - 1
    W0, b0 = wxs[0]
    Wy, by = wy
    z = jnp.concatenate([x @ W0.T + b0, y @ Wy.T + by], axis=1)
    for i in range(1, n_layers + 1):
        W, b = wxs[i]
        z = z @ W.T + b
        if i != n_layers:
            z = jnp.where(z > 0, z, 0.2 * z)
    return z


# ----------------------------------------------------------------------------
# Main
# ----------------------------------------------------------------------------
if __name__ == "__main__":
    # Small, module-consistent sizes.
    batch = 16
    input_dim = 16
    input_dim_label = 8
    hidden_units = [32, 32]          # units -> n_layers = 2

    key = jax.random.PRNGKey(0)
    keys = jax.random.split(key, 16)
    kit = iter(keys)

    def init_linear(kin, in_dim, out_dim):
        kw, kb = jax.random.split(kin)
        W = jax.random.normal(kw, (out_dim, in_dim), jnp.float32) * 0.1
        b = jax.random.normal(kb, (out_dim,), jnp.float32) * 0.1
        return W, b

    # wxs: Linear(input_dim, u0), Linear(2*u0, u1), ..., Linear(u_last, 1)
    in_dims = [input_dim] + [2 * hidden_units[0]] + hidden_units[1:]
    out_dims = hidden_units + [1]
    wxs = [init_linear(next(kit), i, o) for i, o in zip(in_dims, out_dims)]
    wy = init_linear(next(kit), input_dim_label, hidden_units[0])

    x = jax.random.normal(next(kit), (batch, input_dim), jnp.float32)
    y = jax.random.normal(next(kit), (batch, input_dim_label), jnp.float32)

    ref = ffnn_reference(x, y, wxs, wy)

    fwd = jax.jit(functools.partial(ffnn_forward, batch_tile=2048))

    # --- f32 path --------------------------------------------------------------
    # Tolerance covers XLA's default TPU matmul precision in the reference
    # (which may use reduced-precision passes) vs the kernel's MXU path.
    params_f32 = prepare_ffnn_params(wxs, wy, compute_dtype=jnp.float32)
    out = jax.block_until_ready(fwd(x, y, params_f32))
    assert out.shape == (batch, 1)
    np.testing.assert_allclose(np.asarray(out), np.asarray(ref),
                               rtol=1e-2, atol=1e-2)

    # --- multi-tile grid + batch padding + 1-D label branch --------------------
    batch2 = 600
    x2 = jax.random.normal(next(kit), (batch2, input_dim), jnp.float32)
    y2 = jax.random.normal(next(kit), (input_dim_label,), jnp.float32)
    ref2 = ffnn_reference(
        x2, jnp.broadcast_to(y2[None, :], (batch2, input_dim_label)), wxs, wy)
    out2 = jax.block_until_ready(fwd(x2, y2, params_f32))
    assert out2.shape == (batch2, 1)
    np.testing.assert_allclose(np.asarray(out2), np.asarray(ref2),
                               rtol=1e-2, atol=1e-2)

    # --- bf16 weights + inputs (MXU-native on v5e/v6e/v7x; f32 accumulate) -----
    # Note: inputs are also quantized to bf16 inside the kernel, so the
    # tolerance reflects input + weight quantization.
    params_bf16 = prepare_ffnn_params(wxs, wy, compute_dtype=jnp.bfloat16)
    out_bf16 = jax.block_until_ready(fwd(x, y, params_bf16))
    np.testing.assert_allclose(np.asarray(out_bf16), np.asarray(ref),
                               rtol=1e-1, atol=1e-1)

    # TODO(synk): FFNN.transport (autograd.grad of forward w.r.t. x) is a
    # backward-pass feature and is not implemented as a Pallas kernel here.

    print("KERNEL_OK")
</pallas_src>

<mosaic_0001>
module attributes {stable_mosaic.version = 11 : i64} {
  func.func @kernel(%arg0: i32, %arg1: memref<256x16xf32, #tpu.memory_space<vmem>>, %arg2: memref<256x8xf32, #tpu.memory_space<vmem>>, %arg3: memref<32x16xf32, #tpu.memory_space<vmem>>, %arg4: memref<32x1xf32, #tpu.memory_space<vmem>>, %arg5: memref<32x8xf32, #tpu.memory_space<vmem>>, %arg6: memref<32x1xf32, #tpu.memory_space<vmem>>, %arg7: memref<32x32xf32, #tpu.memory_space<vmem>>, %arg8: memref<32x32xf32, #tpu.memory_space<vmem>>, %arg9: memref<32x1xf32, #tpu.memory_space<vmem>>, %arg10: memref<1x32xf32, #tpu.memory_space<vmem>>, %arg11: memref<1x1xf32, #tpu.memory_space<vmem>>, %arg12: memref<1x256xf32, #tpu.memory_space<vmem>>) attributes {dimension_semantics = [#tpu.dimension_semantics<parallel>], iteration_bounds = array<i64: 1>, scalar_prefetch = 0 : i64, scratch_operands = 0 : i64, tpu.core_type = #tpu.core_type<tc>, window_params = [{transform_indices = @transform_0, window_bounds = array<i64: 256, 16>}, {transform_indices = @transform_1, window_bounds = array<i64: 256, 8>}, {pipeline_mode = #tpu.pipeline_mode<synchronous>, transform_indices = @transform_2, window_bounds = array<i64: 32, 16>}, {pipeline_mode = #tpu.pipeline_mode<synchronous>, transform_indices = @transform_3, window_bounds = array<i64: 32, 1>}, {pipeline_mode = #tpu.pipeline_mode<synchronous>, transform_indices = @transform_4, window_bounds = array<i64: 32, 8>}, {pipeline_mode = #tpu.pipeline_mode<synchronous>, transform_indices = @transform_5, window_bounds = array<i64: 32, 1>}, {pipeline_mode = #tpu.pipeline_mode<synchronous>, transform_indices = @transform_6, window_bounds = array<i64: 32, 32>}, {pipeline_mode = #tpu.pipeline_mode<synchronous>, transform_indices = @transform_7, window_bounds = array<i64: 32, 32>}, {pipeline_mode = #tpu.pipeline_mode<synchronous>, transform_indices = @transform_8, window_bounds = array<i64: 32, 1>}, {pipeline_mode = #tpu.pipeline_mode<synchronous>, transform_indices = @transform_9, window_bounds = array<i64: 1, 32>}, {pipeline_mode = #tpu.pipeline_mode<synchronous>, transform_indices = @transform_10, window_bounds = array<i64: 1, 1>}, {transform_indices = @transform_11, window_bounds = array<i64: 1, 256>}]} {
    %c0 = arith.constant 0 : index
    %c0_0 = arith.constant 0 : index
    %0 = vector.load %arg3[%c0, %c0_0] : memref<32x16xf32, #tpu.memory_space<vmem>>, vector<32x16xf32>
    %c0_1 = arith.constant 0 : index
    %c0_2 = arith.constant 0 : index
    %1 = vector.load %arg4[%c0_1, %c0_2] : memref<32x1xf32, #tpu.memory_space<vmem>>, vector<32x1xf32>
    %c0_3 = arith.constant 0 : index
    %c0_4 = arith.constant 0 : index
    %2 = vector.load %arg5[%c0_3, %c0_4] : memref<32x8xf32, #tpu.memory_space<vmem>>, vector<32x8xf32>
    %c0_5 = arith.constant 0 : index
    %c0_6 = arith.constant 0 : index
    %3 = vector.load %arg6[%c0_5, %c0_6] : memref<32x1xf32, #tpu.memory_space<vmem>>, vector<32x1xf32>
    %c0_7 = arith.constant 0 : index
    %c0_8 = arith.constant 0 : index
    %4 = vector.load %arg7[%c0_7, %c0_8] : memref<32x32xf32, #tpu.memory_space<vmem>>, vector<32x32xf32>
    %c0_9 = arith.constant 0 : index
    %c0_10 = arith.constant 0 : index
    %5 = vector.load %arg8[%c0_9, %c0_10] : memref<32x32xf32, #tpu.memory_space<vmem>>, vector<32x32xf32>
    %c0_11 = arith.constant 0 : index
    %c0_12 = arith.constant 0 : index
    %6 = vector.load %arg9[%c0_11, %c0_12] : memref<32x1xf32, #tpu.memory_space<vmem>>, vector<32x1xf32>
    %c0_13 = arith.constant 0 : index
    %c0_14 = arith.constant 0 : index
    %7 = vector.load %arg1[%c0_13, %c0_14] : memref<256x16xf32, #tpu.memory_space<vmem>>, vector<256x16xf32>
    %cst = arith.constant dense<0.000000e+00> : vector<32x256xf32>
    %8 = tpu.matmul %0, %7, %cst {dimension_numbers = #tpu.dot_dimension_numbers<[1], [1], [0], [0], [0, 0, 1, 0], [], []>} : vector<32x16xf32>, vector<256x16xf32>, vector<32x256xf32> -> vector<32x256xf32>
    %9 = vector.broadcast %1 : vector<32x1xf32> to vector<32x256xf32>
    %10 = arith.addf %8, %9 : vector<32x256xf32>
    %c0_15 = arith.constant 0 : index
    %c0_16 = arith.constant 0 : index
    %11 = vector.load %arg2[%c0_15, %c0_16] : memref<256x8xf32, #tpu.memory_space<vmem>>, vector<256x8xf32>
    %cst_17 = arith.constant dense<0.000000e+00> : vector<32x256xf32>
    %12 = tpu.matmul %2, %11, %cst_17 {dimension_numbers = #tpu.dot_dimension_numbers<[1], [1], [0], [0], [0, 0, 1, 0], [], []>} : vector<32x8xf32>, vector<256x8xf32>, vector<32x256xf32> -> vector<32x256xf32>
    %13 = vector.broadcast %3 : vector<32x1xf32> to vector<32x256xf32>
    %14 = arith.addf %12, %13 : vector<32x256xf32>
    %cst_18 = arith.constant dense<0.000000e+00> : vector<32x256xf32>
    %15 = tpu.matmul %4, %10, %cst_18 {dimension_numbers = #tpu.dot_dimension_numbers<[1], [0], [0], [1], [0, 0, 1, 1], [], []>} : vector<32x32xf32>, vector<32x256xf32>, vector<32x256xf32> -> vector<32x256xf32>
    %cst_19 = arith.constant dense<0.000000e+00> : vector<32x256xf32>
    %16 = tpu.matmul %5, %14, %cst_19 {dimension_numbers = #tpu.dot_dimension_numbers<[1], [0], [0], [1], [0, 0, 1, 1], [], []>} : vector<32x32xf32>, vector<32x256xf32>, vector<32x256xf32> -> vector<32x256xf32>
    %17 = arith.addf %15, %16 : vector<32x256xf32>
    %18 = vector.broadcast %6 : vector<32x1xf32> to vector<32x256xf32>
    %19 = arith.addf %17, %18 : vector<32x256xf32>
    %cst_20 = arith.constant 2.000000e-01 : f32
    %20 = vector.broadcast %cst_20 : f32 to vector<32x256xf32>
    %21 = arith.mulf %20, %19 : vector<32x256xf32>
    %22 = arith.maximumf %19, %21 : vector<32x256xf32>
    %c0_21 = arith.constant 0 : index
    %c0_22 = arith.constant 0 : index
    %23 = vector.load %arg10[%c0_21, %c0_22] : memref<1x32xf32, #tpu.memory_space<vmem>>, vector<1x32xf32>
    %c0_23 = arith.constant 0 : index
    %c0_24 = arith.constant 0 : index
    %24 = vector.load %arg11[%c0_23, %c0_24] : memref<1x1xf32, #tpu.memory_space<vmem>>, vector<1x1xf32>
    %cst_25 = arith.constant dense<0.000000e+00> : vector<1x256xf32>
    %25 = tpu.matmul %23, %22, %cst_25 {dimension_numbers = #tpu.dot_dimension_numbers<[1], [0], [0], [1], [0, 0, 1, 1], [], []>} : vector<1x32xf32>, vector<32x256xf32>, vector<1x256xf32> -> vector<1x256xf32>
    %26 = vector.broadcast %24 : vector<1x1xf32> to vector<1x256xf32>
    %27 = arith.addf %25, %26 : vector<1x256xf32>
    %c0_26 = arith.constant 0 : index
    %c0_27 = arith.constant 0 : index
    %28 = vector.load %arg12[%c0_26, %c0_27] : memref<1x256xf32, #tpu.memory_space<vmem>>, vector<1x256xf32>
    tpu.vector_store %arg12[%c0_26, %c0_27], %27 {strides = array<i32>} : memref<1x256xf32, #tpu.memory_space<vmem>>, vector<1x256xf32>,
    return
  }
  func.func @transform_0(%arg0: i32) -> (i32, i32) {
    %c0_i32 = arith.constant 0 : i32
    %c0_i32_0 = arith.constant 0 : i32
    return %arg0, %c0_i32 : i32, i32
  }
  func.func @transform_1(%arg0: i32) -> (i32, i32) {
    %c0_i32 = arith.constant 0 : i32
    %c0_i32_0 = arith.constant 0 : i32
    return %arg0, %c0_i32 : i32, i32
  }
  func.func @transform_2(%arg0: i32) -> (i32, i32) {
    %c0_i32 = arith.constant 0 : i32
    %c0_i32_0 = arith.constant 0 : i32
    %c0_i32_1 = arith.constant 0 : i32
    return %c0_i32, %c0_i32_0 : i32, i32
  }
  func.func @transform_3(%arg0: i32) -> (i32, i32) {
    %c0_i32 = arith.constant 0 : i32
    %c0_i32_0 = arith.constant 0 : i32
    %c0_i32_1 = arith.constant 0 : i32
    return %c0_i32, %c0_i32_0 : i32, i32
  }
  func.func @transform_4(%arg0: i32) -> (i32, i32) {
    %c0_i32 = arith.constant 0 : i32
    %c0_i32_0 = arith.constant 0 : i32
    %c0_i32_1 = arith.constant 0 : i32
    return %c0_i32, %c0_i32_0 : i32, i32
  }
  func.func @transform_5(%arg0: i32) -> (i32, i32) {
    %c0_i32 = arith.constant 0 : i32
    %c0_i32_0 = arith.constant 0 : i32
    %c0_i32_1 = arith.constant 0 : i32
    return %c0_i32, %c0_i32_0 : i32, i32
  }
  func.func @transform_6(%arg0: i32) -> (i32, i32) {
    %c0_i32 = arith.constant 0 : i32
    %c0_i32_0 = arith.constant 0 : i32
    %c0_i32_1 = arith.constant 0 : i32
    return %c0_i32, %c0_i32_0 : i32, i32
  }
  func.func @transform_7(%arg0: i32) -> (i32, i32) {
    %c0_i32 = arith.constant 0 : i32
    %c0_i32_0 = arith.constant 0 : i32
    %c0_i32_1 = arith.constant 0 : i32
    return %c0_i32, %c0_i32_0 : i32, i32
  }
  func.func @transform_8(%arg0: i32) -> (i32, i32) {
    %c0_i32 = arith.constant 0 : i32
    %c0_i32_0 = arith.constant 0 : i32
    %c0_i32_1 = arith.constant 0 : i32
    return %c0_i32, %c0_i32_0 : i32, i32
  }
  func.func @transform_9(%arg0: i32) -> (i32, i32) {
    %c0_i32 = arith.constant 0 : i32
    %c0_i32_0 = arith.constant 0 : i32
    %c0_i32_1 = arith.constant 0 : i32
    return %c0_i32, %c0_i32_0 : i32, i32
  }
  func.func @transform_10(%arg0: i32) -> (i32, i32) {
    %c0_i32 = arith.constant 0 : i32
    %c0_i32_0 = arith.constant 0 : i32
    %c0_i32_1 = arith.constant 0 : i32
    return %c0_i32, %c0_i32_0 : i32, i32
  }
  func.func @transform_11(%arg0: i32) -> (i32, i32) {
    %c0_i32 = arith.constant 0 : i32
    %c0_i32_0 = arith.constant 0 : i32
    return %c0_i32, %arg0 : i32, i32
  }
}

</mosaic_0001>

<llo_original>
// kernel: ffnn_forward.1
$region0: #{ffnn_forward.1}
  #allocation0 [shape = 'u32[]', space=smem, size = 0x4, offset = 0x4, fixed_abs, tag = 'smem constant byte address 0x4 - core index']
  #allocation1 [shape = 'u32[144,128]{1,0:T(1,128)}', space=vmem, size = 0x12000, scoped, tag = 'internal scratch']
  #allocation2 [shape = 'f32[1,1]{1,0:T(1,128)S(1)}', space=vmem, size = 0x200, scoped, tag = 'scoped memory for ffnn_forward.1']
  %s0 = inlined_call_operand.vmem [shape: f32[256,16], index: 0, kind: input, shape index: {}]
  %s1 = inlined_call_operand.vmem [shape: f32[256,8], index: 1, kind: input, shape index: {}]
  %s2 = inlined_call_operand.vmem [shape: f32[32,16], index: 2, kind: input, shape index: {}]
  %s3 = inlined_call_operand.vmem [shape: f32[32,1], index: 3, kind: input, shape index: {}]
  %s4 = inlined_call_operand.vmem [shape: f32[32,8], index: 4, kind: input, shape index: {}]
  %s5 = inlined_call_operand.vmem [shape: f32[32,1], index: 5, kind: input, shape index: {}]
  %s6 = inlined_call_operand.vmem [shape: f32[32,32], index: 6, kind: input, shape index: {}]
  %s7 = inlined_call_operand.vmem [shape: f32[32,32], index: 7, kind: input, shape index: {}]
  %s8 = inlined_call_operand.vmem [shape: f32[32,1], index: 8, kind: input, shape index: {}]
  %s9 = inlined_call_operand.vmem [shape: f32[1,32], index: 9, kind: input, shape index: {}]
  %s10 = inlined_call_operand.<no memory space> [shape: f32[1,1], index: 10, kind: input, shape index: {}]
  %s11 = inlined_call_operand.vmem [shape: f32[1,256], index: 11, kind: output, shape index: {}]
  %s12 = sld [smem:[#allocation0]]
  $region54: #{ffnn_forward.1} parent=0
    _
  %s14 = ssub.s32 1, %s12
  %s15 = scalar_select 0, %s14, %s12
  %v16 = vstv %s10
  %17 = vst [vmem:[#allocation2] sm:$0x1] %v16
  // Predicated region
  $region2: #{ffnn_forward.1} parent=0 // pred_check
    _
  $region3: #{ffnn_forward.1} parent=0 // pred_check_branch
    %19 = sbr.rel (0) target = $region5
  $region4: #{ffnn_forward.1} parent=0 // pred_region
    _
  $region5: #{ffnn_forward.1} parent=0 // pred_fallthru
    _
  // Predicated region
  $region6: #{ffnn_forward.1} parent=0 // pred_check
    _
  $region7: #{ffnn_forward.1} parent=0 // pred_check_branch
    %21 = sbr.rel (0) target = $region9
  $region8: #{ffnn_forward.1} parent=0 // pred_region
    _
  $region9: #{ffnn_forward.1} parent=0 // pred_fallthru
    _
  // Predicated region
  $region10: #{ffnn_forward.1} parent=0 // pred_check
    _
  $region11: #{ffnn_forward.1} parent=0 // pred_check_branch
    %23 = sbr.rel (0) target = $region13
  $region12: #{ffnn_forward.1} parent=0 // pred_region
    _
  $region13: #{ffnn_forward.1} parent=0 // pred_fallthru
    _
  // Predicated region
  $region14: #{ffnn_forward.1} parent=0 // pred_check
    _
  $region15: #{ffnn_forward.1} parent=0 // pred_check_branch
    %25 = sbr.rel (0) target = $region17
  $region16: #{ffnn_forward.1} parent=0 // pred_region
    _
  $region17: #{ffnn_forward.1} parent=0 // pred_fallthru
    _
  // Predicated region
  $region18: #{ffnn_forward.1} parent=0 // pred_check
    _
  $region19: #{ffnn_forward.1} parent=0 // pred_check_branch
    %27 = sbr.rel (0) target = $region21
  $region20: #{ffnn_forward.1} parent=0 // pred_region
    _
  $region21: #{ffnn_forward.1} parent=0 // pred_fallthru
    _
  // Predicated region
  $region22: #{ffnn_forward.1} parent=0 // pred_check
    _
  $region23: #{ffnn_forward.1} parent=0 // pred_check_branch
    %29 = sbr.rel (0) target = $region25
  $region24: #{ffnn_forward.1} parent=0 // pred_region
    _
  $region25: #{ffnn_forward.1} parent=0 // pred_fallthru
    _
  // Predicated region
  $region26: #{ffnn_forward.1} parent=0 // pred_check
    _
  $region27: #{ffnn_forward.1} parent=0 // pred_check_branch
    %31 = sbr.rel (0) target = $region29
  $region28: #{ffnn_forward.1} parent=0 // pred_region
    _
  $region29: #{ffnn_forward.1} parent=0 // pred_fallthru
    _
  // Predicated region
  $region30: #{ffnn_forward.1} parent=0 // pred_check
    _
  $region31: #{ffnn_forward.1} parent=0 // pred_check_branch
    %33 = sbr.rel (0) target = $region33
  $region32: #{ffnn_forward.1} parent=0 // pred_region
    _
  $region33: #{ffnn_forward.1} parent=0 // pred_fallthru
    _
  // Predicated region
  $region34: #{ffnn_forward.1} parent=0 // pred_check
    _
  $region35: #{ffnn_forward.1} parent=0 // pred_check_branch
    %35 = sbr.rel (0) target = $region37
  $region36: #{ffnn_forward.1} parent=0 // pred_region
    _
  $region37: #{ffnn_forward.1} parent=0 // pred_fallthru
    _
  // Predicated region
  $region38: #{ffnn_forward.1} parent=0 // pred_check
    _
  $region39: #{ffnn_forward.1} parent=0 // pred_check_branch
    %37 = sbr.rel (0) target = $region41
  $region40: #{ffnn_forward.1} parent=0 // pred_region
    _
  $region41: #{ffnn_forward.1} parent=0 // pred_fallthru
    _
  // Predicated region
  $region42: #{ffnn_forward.1} parent=0 // pred_check
    _
  $region43: #{ffnn_forward.1} parent=0 // pred_check_branch
    %39 = sbr.rel (0) target = $region45
  $region44: #{ffnn_forward.1} parent=0 // pred_region
    _
  $region45: #{ffnn_forward.1} parent=0 // pred_fallthru
    _
  %v40 = vld [vmem:[%s2] sm:$0xff]
  %v41 = vld [vmem:[%s2 + $0x8] sm:$0xff]
  %v42 = vld [vmem:[%s2 + $0x10] sm:$0xff]
  %v43 = vld [vmem:[%s2 + $0x18] sm:$0xff]
  %v44 = vld [vmem:[%s3] sm:$0xff]
  %v45 = vld [vmem:[%s3 + $0x8] sm:$0xff]
  %v46 = vld [vmem:[%s3 + $0x10] sm:$0xff]
  %v47 = vld [vmem:[%s3 + $0x18] sm:$0xff]
  %v48 = vld [vmem:[%s4] sm:$0xff]
  %v49 = vld [vmem:[%s4 + $0x8] sm:$0xff]
  %v50 = vld [vmem:[%s4 + $0x10] sm:$0xff]
  %v51 = vld [vmem:[%s4 + $0x18] sm:$0xff]
  %v52 = vld [vmem:[%s5] sm:$0xff]
  %v53 = vld [vmem:[%s5 + $0x8] sm:$0xff]
  %v54 = vld [vmem:[%s5 + $0x10] sm:$0xff]
  %v55 = vld [vmem:[%s5 + $0x18] sm:$0xff]
  %v56 = vld [vmem:[%s6] sm:$0xff]
  %v57 = vld [vmem:[%s6 + $0x8] sm:$0xff]
  %v58 = vld [vmem:[%s6 + $0x10] sm:$0xff]
  %v59 = vld [vmem:[%s6 + $0x18] sm:$0xff]
  %v60 = vld [vmem:[%s7] sm:$0xff]
  %v61 = vld [vmem:[%s7 + $0x8] sm:$0xff]
  %v62 = vld [vmem:[%s7 + $0x10] sm:$0xff]
  %v63 = vld [vmem:[%s7 + $0x18] sm:$0xff]
  %v64 = vld [vmem:[%s8] sm:$0xff]
  %v65 = vld [vmem:[%s8 + $0x8] sm:$0xff]
  %v66 = vld [vmem:[%s8 + $0x10] sm:$0xff]
  %v67 = vld [vmem:[%s8 + $0x18] sm:$0xff]
  %v68 = vld [vmem:[%s0] sm:$0xff]
  %v69 = vld [vmem:[%s0 + $0x8] sm:$0xff]
  %v70 = vld [vmem:[%s0 + $0x10] sm:$0xff]
  %v71 = vld [vmem:[%s0 + $0x18] sm:$0xff]
  %v72 = vld [vmem:[%s0 + $0x20] sm:$0xff]
  %v73 = vld [vmem:[%s0 + $0x28] sm:$0xff]
  %v74 = vld [vmem:[%s0 + $0x30] sm:$0xff]
  %v75 = vld [vmem:[%s0 + $0x38] sm:$0xff]
  %v76 = vld [vmem:[%s0 + $0x40] sm:$0xff]
  %v77 = vld [vmem:[%s0 + $0x48] sm:$0xff]
  %v78 = vld [vmem:[%s0 + $0x50] sm:$0xff]
  %v79 = vld [vmem:[%s0 + $0x58] sm:$0xff]
  %v80 = vld [vmem:[%s0 + $0x60] sm:$0xff]
  %v81 = vld [vmem:[%s0 + $0x68] sm:$0xff]
  %v82 = vld [vmem:[%s0 + $0x70] sm:$0xff]
  %v83 = vld [vmem:[%s0 + $0x78] sm:$0xff]
  %v84 = vld [vmem:[%s0 + $0x80] sm:$0xff]
  %v85 = vld [vmem:[%s0 + $0x88] sm:$0xff]
  %v86 = vld [vmem:[%s0 + $0x90] sm:$0xff]
  %v87 = vld [vmem:[%s0 + $0x98] sm:$0xff]
  %v88 = vld [vmem:[%s0 + $0xa0] sm:$0xff]
  %v89 = vld [vmem:[%s0 + $0xa8] sm:$0xff]
  %v90 = vld [vmem:[%s0 + $0xb0] sm:$0xff]
  %v91 = vld [vmem:[%s0 + $0xb8] sm:$0xff]
  %v92 = vld [vmem:[%s0 + $0xc0] sm:$0xff]
  %v93 = vld [vmem:[%s0 + $0xc8] sm:$0xff]
  %v94 = vld [vmem:[%s0 + $0xd0] sm:$0xff]
  %v95 = vld [vmem:[%s0 + $0xd8] sm:$0xff]
  %v96 = vld [vmem:[%s0 + $0xe0] sm:$0xff]
  %v97 = vld [vmem:[%s0 + $0xe8] sm:$0xff]
  %v98 = vld [vmem:[%s0 + $0xf0] sm:$0xff]
  %v99 = vld [vmem:[%s0 + $0xf8] sm:$0xff]
  %101 = vset.pattern.permute.xlu0 0
  %102 = vperm.xlu0 %101, %v44
  %v103 = vpop.permute.xlu0 %102
  %106 = vset.pattern.permute.xlu0 0
  %107 = vperm.xlu0 %106, %v45
  %v108 = vpop.permute.xlu0 %107
  %111 = vset.pattern.permute.xlu0 0
  %112 = vperm.xlu0 %111, %v46
  %v113 = vpop.permute.xlu0 %112
  %116 = vset.pattern.permute.xlu0 0
  %117 = vperm.xlu0 %116, %v47
  %v118 = vpop.permute.xlu0 %117
  %vm120 = vcmask 130048
  %v122 = vsel %vm120, %v40, 0
  %v125 = vsel %vm120, %v41, 0
  %v128 = vsel %vm120, %v42, 0
  %v131 = vsel %vm120, %v43, 0
  %v134 = vsel %vm120, %v68, 0
  %v137 = vsel %vm120, %v69, 0
  %v140 = vsel %vm120, %v70, 0
  %v143 = vsel %vm120, %v71, 0
  %v146 = vsel %vm120, %v72, 0
  %v149 = vsel %vm120, %v73, 0
  %v152 = vsel %vm120, %v74, 0
  %v155 = vsel %vm120, %v75, 0
  %v158 = vsel %vm120, %v76, 0
  %v161 = vsel %vm120, %v77, 0
  %v164 = vsel %vm120, %v78, 0
  %v167 = vsel %vm120, %v79, 0
  %v170 = vsel %vm120, %v80, 0
  %v173 = vsel %vm120, %v81, 0
  %v176 = vsel %vm120, %v82, 0
  %v179 = vsel %vm120, %v83, 0
  %v182 = vsel %vm120, %v84, 0
  %v185 = vsel %vm120, %v85, 0
  %v188 = vsel %vm120, %v86, 0
  %v191 = vsel %vm120, %v87, 0
  %v194 = vsel %vm120, %v88, 0
  %v197 = vsel %vm120, %v89, 0
  %v200 = vsel %vm120, %v90, 0
  %v203 = vsel %vm120, %v91, 0
  %v206 = vsel %vm120, %v92, 0
  %v209 = vsel %vm120, %v93, 0
  %v212 = vsel %vm120, %v94, 0
  %v215 = vsel %vm120, %v95, 0
  %v218 = vsel %vm120, %v96, 0
  %v221 = vsel %vm120, %v97, 0
  %v224 = vsel %vm120, %v98, 0
  %v227 = vsel %vm120, %v99, 0
  %229 = vmatprep.subr.mxu0 0.0
  %230 = vmatpush1.xpose.msra.mxu0 %v179
  %231 = vmatprep.subr.mxu0 0.0
  %232 = vmatpush1.xpose.msra.mxu0 %v176
  %233 = vmatprep.subr.mxu0 0.0
  %234 = vmatpush1.xpose.msra.mxu0 %v173
  %235 = vmatprep.subr.mxu0 0.0
  %236 = vmatpush1.xpose.msra.mxu0 %v170
  %237 = vmatprep.subr.mxu0 0.0
  %238 = vmatpush1.xpose.msra.mxu0 %v167
  %239 = vmatprep.subr.mxu0 0.0
  %240 = vmatpush1.xpose.msra.mxu0 %v164
  %241 = vmatprep.subr.mxu0 0.0
  %242 = vmatpush1.xpose.msra.mxu0 %v161
  %243 = vmatprep.subr.mxu0 0.0
  %244 = vmatpush1.xpose.msra.mxu0 %v158
  %245 = vmatprep.subr.mxu0 0.0
  %246 = vmatpush1.xpose.msra.mxu0 %v155
  %247 = vmatprep.subr.mxu0 0.0
  %248 = vmatpush1.xpose.msra.mxu0 %v152
  %249 = vmatprep.subr.mxu0 0.0
  %250 = vmatpush1.xpose.msra.mxu0 %v149
  %251 = vmatprep.subr.mxu0 0.0
  %252 = vmatpush1.xpose.msra.mxu0 %v146
  %253 = vmatprep.subr.mxu0 0.0
  %254 = vmatpush1.xpose.msra.mxu0 %v143
  %255 = vmatprep.subr.mxu0 0.0
  %256 = vmatpush1.xpose.msra.mxu0 %v140
  %257 = vmatprep.subr.mxu0 0.0
  %258 = vmatpush1.xpose.msra.mxu0 %v137
  %259 = vmatprep.subr.mxu0 0.0
  %260 = vmatpush1.xpose.msra.mxu0 %v134
  %261 = vmatprep.subr.mxu0 0.0
  %262 = vmatpush2.xpose.msra.mxu0 %v227
  %263 = vmatprep.subr.mxu0 0.0
  %264 = vmatpush2.xpose.msra.mxu0 %v224
  %265 = vmatprep.subr.mxu0 0.0
  %266 = vmatpush2.xpose.msra.mxu0 %v221
  %267 = vmatprep.subr.mxu0 0.0
  %268 = vmatpush2.xpose.msra.mxu0 %v218
  %269 = vmatprep.subr.mxu0 0.0
  %270 = vmatpush2.xpose.msra.mxu0 %v215
  %271 = vmatprep.subr.mxu0 0.0
  %272 = vmatpush2.xpose.msra.mxu0 %v212
  %273 = vmatprep.subr.mxu0 0.0
  %274 = vmatpush2.xpose.msra.mxu0 %v209
  %275 = vmatprep.subr.mxu0 0.0
  %276 = vmatpush2.xpose.msra.mxu0 %v206
  %277 = vmatprep.subr.mxu0 0.0
  %278 = vmatpush2.xpose.msra.mxu0 %v203
  %279 = vmatprep.subr.mxu0 0.0
  %280 = vmatpush2.xpose.msra.mxu0 %v200
  %281 = vmatprep.subr.mxu0 0.0
  %282 = vmatpush2.xpose.msra.mxu0 %v197
  %283 = vmatprep.subr.mxu0 0.0
  %284 = vmatpush2.xpose.msra.mxu0 %v194
  %285 = vmatprep.subr.mxu0 0.0
  %286 = vmatpush2.xpose.msra.mxu0 %v191
  %287 = vmatprep.subr.mxu0 0.0
  %288 = vmatpush2.xpose.msra.mxu0 %v188
  %289 = vmatprep.subr.mxu0 0.0
  %290 = vmatpush2.xpose.msra.mxu0 %v185
  %291 = vmatprep.subr.mxu0 0.0
  %292 = vmatpush2.xpose.msra.mxu0 %v182
  %293 = vmatprep.mubr.f32.mxu0 0.0
  %294 = vmatmul.mubr.f32.gmra.mxu0 %v122
  %v295 = vpop.f32.mrf.mxu0
  %v296 = vadd.f32 %v103, %v295
  %v297 = vpop.f32.mrf.mxu0
  %v298 = vadd.f32 %v103, %v297
  %299 = vmatprep.mubr.f32.mxu0 0.0
  %300 = vmatmul.mubr.f32.gmra.mxu0 %v125
  %v301 = vpop.f32.mrf.mxu0
  %v302 = vadd.f32 %v108, %v301
  %v303 = vpop.f32.mrf.mxu0
  %v304 = vadd.f32 %v108, %v303
  %305 = vmatprep.mubr.f32.mxu0 0.0
  %306 = vmatmul.mubr.f32.gmra.mxu0 %v128
  %v307 = vpop.f32.mrf.mxu0
  %v308 = vadd.f32 %v113, %v307
  %v309 = vpop.f32.mrf.mxu0
  %v310 = vadd.f32 %v113, %v309
  %311 = vmatprep.mubr.f32.mxu0 0.0
  %312 = vmatmul.mubr.f32.gmra.mxu0 %v131
  %v313 = vpop.f32.mrf.mxu0
  %v314 = vadd.f32 %v118, %v313
  %v315 = vpop.f32.mrf.mxu0
  %v316 = vadd.f32 %v118, %v315
  %317 = vdwg.mxu0
  %v318 = vld [vmem:[%s1] sm:$0xff]
  %v319 = vld [vmem:[%s1 + $0x8] sm:$0xff]
  %v320 = vld [vmem:[%s1 + $0x10] sm:$0xff]
  %v321 = vld [vmem:[%s1 + $0x18] sm:$0xff]
  %v322 = vld [vmem:[%s1 + $0x20] sm:$0xff]
  %v323 = vld [vmem:[%s1 + $0x28] sm:$0xff]
  %v324 = vld [vmem:[%s1 + $0x30] sm:$0xff]
  %v325 = vld [vmem:[%s1 + $0x38] sm:$0xff]
  %v326 = vld [vmem:[%s1 + $0x40] sm:$0xff]
  %v327 = vld [vmem:[%s1 + $0x48] sm:$0xff]
  %v328 = vld [vmem:[%s1 + $0x50] sm:$0xff]
  %v329 = vld [vmem:[%s1 + $0x58] sm:$0xff]
  %v330 = vld [vmem:[%s1 + $0x60] sm:$0xff]
  %v331 = vld [vmem:[%s1 + $0x68] sm:$0xff]
  %v332 = vld [vmem:[%s1 + $0x70] sm:$0xff]
  %v333 = vld [vmem:[%s1 + $0x78] sm:$0xff]
  %v334 = vld [vmem:[%s1 + $0x80] sm:$0xff]
  %v335 = vld [vmem:[%s1 + $0x88] sm:$0xff]
  %v336 = vld [vmem:[%s1 + $0x90] sm:$0xff]
  %v337 = vld [vmem:[%s1 + $0x98] sm:$0xff]
  %v338 = vld [vmem:[%s1 + $0xa0] sm:$0xff]
  %v339 = vld [vmem:[%s1 + $0xa8] sm:$0xff]
  %v340 = vld [vmem:[%s1 + $0xb0] sm:$0xff]
  %v341 = vld [vmem:[%s1 + $0xb8] sm:$0xff]
  %v342 = vld [vmem:[%s1 + $0xc0] sm:$0xff]
  %v343 = vld [vmem:[%s1 + $0xc8] sm:$0xff]
  %v344 = vld [vmem:[%s1 + $0xd0] sm:$0xff]
  %v345 = vld [vmem:[%s1 + $0xd8] sm:$0xff]
  %v346 = vld [vmem:[%s1 + $0xe0] sm:$0xff]
  %v347 = vld [vmem:[%s1 + $0xe8] sm:$0xff]
  %v348 = vld [vmem:[%s1 + $0xf0] sm:$0xff]
  %v349 = vld [vmem:[%s1 + $0xf8] sm:$0xff]
  %351 = vset.pattern.permute.xlu0 0
  %352 = vperm.xlu0 %351, %v52
  %v353 = vpop.permute.xlu0 %352
  %356 = vset.pattern.permute.xlu0 0
  %357 = vperm.xlu0 %356, %v53
  %v358 = vpop.permute.xlu0 %357
  %361 = vset.pattern.permute.xlu0 0
  %362 = vperm.xlu0 %361, %v54
  %v363 = vpop.permute.xlu0 %362
  %366 = vset.pattern.permute.xlu0 0
  %367 = vperm.xlu0 %366, %v55
  %v368 = vpop.permute.xlu0 %367
  %vm370 = vcmask 64512
  %v372 = vsel %vm370, %v48, 0
  %v375 = vsel %vm370, %v49, 0
  %v378 = vsel %vm370, %v50, 0
  %v381 = vsel %vm370, %v51, 0
  %v384 = vsel %vm370, %v318, 0
  %v387 = vsel %vm370, %v319, 0
  %v390 = vsel %vm370, %v320, 0
  %v393 = vsel %vm370, %v321, 0
  %v396 = vsel %vm370, %v322, 0
  %v399 = vsel %vm370, %v323, 0
  %v402 = vsel %vm370, %v324, 0
  %v405 = vsel %vm370, %v325, 0
  %v408 = vsel %vm370, %v326, 0
  %v411 = vsel %vm370, %v327, 0
  %v414 = vsel %vm370, %v328, 0
  %v417 = vsel %vm370, %v329, 0
  %v420 = vsel %vm370, %v330, 0
  %v423 = vsel %vm370, %v331, 0
  %v426 = vsel %vm370, %v332, 0
  %v429 = vsel %vm370, %v333, 0
  %v432 = vsel %vm370, %v334, 0
  %v435 = vsel %vm370, %v335, 0
  %v438 = vsel %vm370, %v336, 0
  %v441 = vsel %vm370, %v337, 0
  %v444 = vsel %vm370, %v338, 0
  %v447 = vsel %vm370, %v339, 0
  %v450 = vsel %vm370, %v340, 0
  %v453 = vsel %vm370, %v341, 0
  %v456 = vsel %vm370, %v342, 0
  %v459 = vsel %vm370, %v343, 0
  %v462 = vsel %vm370, %v344, 0
  %v465 = vsel %vm370, %v345, 0
  %v468 = vsel %vm370, %v346, 0
  %v471 = vsel %vm370, %v347, 0
  %v474 = vsel %vm370, %v348, 0
  %v477 = vsel %vm370, %v349, 0
  %479 = vmatprep.subr.mxu0 0.0
  %480 = vmatpush1.xpose.msra.mxu0 %v429
  %481 = vmatprep.subr.mxu0 0.0
  %482 = vmatpush1.xpose.msra.mxu0 %v426
  %483 = vmatprep.subr.mxu0 0.0
  %484 = vmatpush1.xpose.msra.mxu0 %v423
  %485 = vmatprep.subr.mxu0 0.0
  %486 = vmatpush1.xpose.msra.mxu0 %v420
  %487 = vmatprep.subr.mxu0 0.0
  %488 = vmatpush1.xpose.msra.mxu0 %v417
  %489 = vmatprep.subr.mxu0 0.0
  %490 = vmatpush1.xpose.msra.mxu0 %v414
  %491 = vmatprep.subr.mxu0 0.0
  %492 = vmatpush1.xpose.msra.mxu0 %v411
  %493 = vmatprep.subr.mxu0 0.0
  %494 = vmatpush1.xpose.msra.mxu0 %v408
  %495 = vmatprep.subr.mxu0 0.0
  %496 = vmatpush1.xpose.msra.mxu0 %v405
  %497 = vmatprep.subr.mxu0 0.0
  %498 = vmatpush1.xpose.msra.mxu0 %v402
  %499 = vmatprep.subr.mxu0 0.0
  %500 = vmatpush1.xpose.msra.mxu0 %v399
  %501 = vmatprep.subr.mxu0 0.0
  %502 = vmatpush1.xpose.msra.mxu0 %v396
  %503 = vmatprep.subr.mxu0 0.0
  %504 = vmatpush1.xpose.msra.mxu0 %v393
  %505 = vmatprep.subr.mxu0 0.0
  %506 = vmatpush1.xpose.msra.mxu0 %v390
  %507 = vmatprep.subr.mxu0 0.0
  %508 = vmatpush1.xpose.msra.mxu0 %v387
  %509 = vmatprep.subr.mxu0 0.0
  %510 = vmatpush1.xpose.msra.mxu0 %v384
  %511 = vmatprep.subr.mxu0 0.0
  %512 = vmatpush2.xpose.msra.mxu0 %v477
  %513 = vmatprep.subr.mxu0 0.0
  %514 = vmatpush2.xpose.msra.mxu0 %v474
  %515 = vmatprep.subr.mxu0 0.0
  %516 = vmatpush2.xpose.msra.mxu0 %v471
  %517 = vmatprep.subr.mxu0 0.0
  %518 = vmatpush2.xpose.msra.mxu0 %v468
  %519 = vmatprep.subr.mxu0 0.0
  %520 = vmatpush2.xpose.msra.mxu0 %v465
  %521 = vmatprep.subr.mxu0 0.0
  %522 = vmatpush2.xpose.msra.mxu0 %v462
  %523 = vmatprep.subr.mxu0 0.0
  %524 = vmatpush2.xpose.msra.mxu0 %v459
  %525 = vmatprep.subr.mxu0 0.0
  %526 = vmatpush2.xpose.msra.mxu0 %v456
  %527 = vmatprep.subr.mxu0 0.0
  %528 = vmatpush2.xpose.msra.mxu0 %v453
  %529 = vmatprep.subr.mxu0 0.0
  %530 = vmatpush2.xpose.msra.mxu0 %v450
  %531 = vmatprep.subr.mxu0 0.0
  %532 = vmatpush2.xpose.msra.mxu0 %v447
  %533 = vmatprep.subr.mxu0 0.0
  %534 = vmatpush2.xpose.msra.mxu0 %v444
  %535 = vmatprep.subr.mxu0 0.0
  %536 = vmatpush2.xpose.msra.mxu0 %v441
  %537 = vmatprep.subr.mxu0 0.0
  %538 = vmatpush2.xpose.msra.mxu0 %v438
  %539 = vmatprep.subr.mxu0 0.0
  %540 = vmatpush2.xpose.msra.mxu0 %v435
  %541 = vmatprep.subr.mxu0 0.0
  %542 = vmatpush2.xpose.msra.mxu0 %v432
  %543 = vmatprep.mubr.f32.mxu0 0.0
  %544 = vmatmul.mubr.f32.gmra.mxu0 %v372
  %v545 = vpop.f32.mrf.mxu0
  %v546 = vadd.f32 %v353, %v545
  %v547 = vpop.f32.mrf.mxu0
  %v548 = vadd.f32 %v353, %v547
  %549 = vmatprep.mubr.f32.mxu0 0.0
  %550 = vmatmul.mubr.f32.gmra.mxu0 %v375
  %v551 = vpop.f32.mrf.mxu0
  %v552 = vadd.f32 %v358, %v551
  %v553 = vpop.f32.mrf.mxu0
  %v554 = vadd.f32 %v358, %v553
  %555 = vmatprep.mubr.f32.mxu0 0.0
  %556 = vmatmul.mubr.f32.gmra.mxu0 %v378
  %v557 = vpop.f32.mrf.mxu0
  %v558 = vadd.f32 %v363, %v557
  %v559 = vpop.f32.mrf.mxu0
  %v560 = vadd.f32 %v363, %v559
  %561 = vmatprep.mubr.f32.mxu0 0.0
  %562 = vmatmul.mubr.f32.gmra.mxu0 %v381
  %v563 = vpop.f32.mrf.mxu0
  %v564 = vadd.f32 %v368, %v563
  %v565 = vpop.f32.mrf.mxu0
  %v566 = vadd.f32 %v368, %v565
  %567 = vdwg.mxu0
  %vm568 = vcmask 261120
  %v570 = vsel %vm568, %v60, 0
  %v573 = vsel %vm568, %v61, 0
  %v576 = vsel %vm568, %v62, 0
  %v579 = vsel %vm568, %v63, 0
  %581 = vmatprep.subr.mxu0 0.0
  %582 = vmatpush1.msra.mxu0 0.0
  %583 = vmatprep.subr.mxu0 0.0
  %584 = vmatpush1.msra.mxu0 0.0
  %585 = vmatprep.subr.mxu0 0.0
  %586 = vmatpush1.msra.mxu0 0.0
  %587 = vmatprep.subr.mxu0 0.0
  %588 = vmatpush1.msra.mxu0 0.0
  %589 = vmatprep.subr.mxu0 0.0
  %590 = vmatpush1.msra.mxu0 0.0
  %591 = vmatprep.subr.mxu0 0.0
  %592 = vmatpush1.msra.mxu0 0.0
  %593 = vmatprep.subr.mxu0 0.0
  %594 = vmatpush1.msra.mxu0 0.0
  %595 = vmatprep.subr.mxu0 0.0
  %596 = vmatpush1.msra.mxu0 0.0
  %597 = vmatprep.subr.mxu0 0.0
  %598 = vmatpush1.msra.mxu0 0.0
  %599 = vmatprep.subr.mxu0 0.0
  %600 = vmatpush1.msra.mxu0 0.0
  %601 = vmatprep.subr.mxu0 0.0
  %602 = vmatpush1.msra.mxu0 0.0
  %603 = vmatprep.subr.mxu0 0.0
  %604 = vmatpush1.msra.mxu0 0.0
  %605 = vmatprep.subr.mxu0 %v566
  %606 = vmatpush1.msra.mxu0 %v564
  %607 = vmatprep.subr.mxu0 %v560
  %608 = vmatpush1.msra.mxu0 %v558
  %609 = vmatprep.subr.mxu0 %v554
  %610 = vmatpush1.msra.mxu0 %v552
  %611 = vmatprep.subr.mxu0 %v548
  %612 = vmatpush1.msra.mxu0 %v546
  %613 = vmatprep.subr.mxu0 0.0
  %614 = vmatpush2.msra.mxu0 0.0
  %615 = vmatprep.subr.mxu0 0.0
  %616 = vmatpush2.msra.mxu0 0.0
  %617 = vmatprep.subr.mxu0 0.0
  %618 = vmatpush2.msra.mxu0 0.0
  %619 = vmatprep.subr.mxu0 0.0
  %620 = vmatpush2.msra.mxu0 0.0
  %621 = vmatprep.subr.mxu0 0.0
  %622 = vmatpush2.msra.mxu0 0.0
  %623 = vmatprep.subr.mxu0 0.0
  %624 = vmatpush2.msra.mxu0 0.0
  %625 = vmatprep.subr.mxu0 0.0
  %626 = vmatpush2.msra.mxu0 0.0
  %627 = vmatprep.subr.mxu0 0.0
  %628 = vmatpush2.msra.mxu0 0.0
  %629 = vmatprep.subr.mxu0 0.0
  %630 = vmatpush2.msra.mxu0 0.0
  %631 = vmatprep.subr.mxu0 0.0
  %632 = vmatpush2.msra.mxu0 0.0
  %633 = vmatprep.subr.mxu0 0.0
  %634 = vmatpush2.msra.mxu0 0.0
  %635 = vmatprep.subr.mxu0 0.0
  %636 = vmatpush2.msra.mxu0 0.0
  %637 = vmatprep.subr.mxu0 0.0
  %638 = vmatpush2.msra.mxu0 0.0
  %639 = vmatprep.subr.mxu0 0.0
  %640 = vmatpush2.msra.mxu0 0.0
  %641 = vmatprep.subr.mxu0 0.0
  %642 = vmatpush2.msra.mxu0 0.0
  %643 = vmatprep.subr.mxu0 0.0
  %644 = vmatpush2.msra.mxu0 0.0
  %645 = vmatprep.mubr.f32.mxu0 0.0
  %646 = vmatmul.mubr.f32.gmra.mxu0 %v570
  %v647 = vpop.f32.mrf.mxu0
  %v648 = vadd.f32 0.0, %v647
  %v649 = vpop.f32.mrf.mxu0
  %v650 = vadd.f32 0.0, %v649
  %651 = vmatprep.mubr.f32.mxu0 0.0
  %652 = vmatmul.mubr.f32.gmra.mxu0 %v573
  %v653 = vpop.f32.mrf.mxu0
  %v654 = vadd.f32 0.0, %v653
  %v655 = vpop.f32.mrf.mxu0
  %v656 = vadd.f32 0.0, %v655
  %657 = vmatprep.mubr.f32.mxu0 0.0
  %658 = vmatmul.mubr.f32.gmra.mxu0 %v576
  %v659 = vpop.f32.mrf.mxu0
  %v660 = vadd.f32 0.0, %v659
  %v661 = vpop.f32.mrf.mxu0
  %v662 = vadd.f32 0.0, %v661
  %663 = vmatprep.mubr.f32.mxu0 0.0
  %664 = vmatmul.mubr.f32.gmra.mxu0 %v579
  %v665 = vpop.f32.mrf.mxu0
  %v666 = vadd.f32 0.0, %v665
  %v667 = vpop.f32.mrf.mxu0
  %v668 = vadd.f32 0.0, %v667
  %669 = vdwg.mxu0
  %v671 = vsel %vm568, %v56, 0
  %v674 = vsel %vm568, %v57, 0
  %v677 = vsel %vm568, %v58, 0
  %v680 = vsel %vm568, %v59, 0
  %682 = vmatprep.subr.mxu0 0.0
  %683 = vmatpush1.msra.mxu0 0.0
  %684 = vmatprep.subr.mxu0 0.0
  %685 = vmatpush1.msra.mxu0 0.0
  %686 = vmatprep.subr.mxu0 0.0
  %687 = vmatpush1.msra.mxu0 0.0
  %688 = vmatprep.subr.mxu0 0.0
  %689 = vmatpush1.msra.mxu0 0.0
  %690 = vmatprep.subr.mxu0 0.0
  %691 = vmatpush1.msra.mxu0 0.0
  %692 = vmatprep.subr.mxu0 0.0
  %693 = vmatpush1.msra.mxu0 0.0
  %694 = vmatprep.subr.mxu0 0.0
  %695 = vmatpush1.msra.mxu0 0.0
  %696 = vmatprep.subr.mxu0 0.0
  %697 = vmatpush1.msra.mxu0 0.0
  %698 = vmatprep.subr.mxu0 0.0
  %699 = vmatpush1.msra.mxu0 0.0
  %700 = vmatprep.subr.mxu0 0.0
  %701 = vmatpush1.msra.mxu0 0.0
  %702 = vmatprep.subr.mxu0 0.0
  %703 = vmatpush1.msra.mxu0 0.0
  %704 = vmatprep.subr.mxu0 0.0
  %705 = vmatpush1.msra.mxu0 0.0
  %706 = vmatprep.subr.mxu0 %v316
  %707 = vmatpush1.msra.mxu0 %v314
  %708 = vmatprep.subr.mxu0 %v310
  %709 = vmatpush1.msra.mxu0 %v308
  %710 = vmatprep.subr.mxu0 %v304
  %711 = vmatpush1.msra.mxu0 %v302
  %712 = vmatprep.subr.mxu0 %v298
  %713 = vmatpush1.msra.mxu0 %v296
  %714 = vmatprep.subr.mxu0 0.0
  %715 = vmatpush2.msra.mxu0 0.0
  %716 = vmatprep.subr.mxu0 0.0
  %717 = vmatpush2.msra.mxu0 0.0
  %718 = vmatprep.subr.mxu0 0.0
  %719 = vmatpush2.msra.mxu0 0.0
  %720 = vmatprep.subr.mxu0 0.0
  %721 = vmatpush2.msra.mxu0 0.0
  %722 = vmatprep.subr.mxu0 0.0
  %723 = vmatpush2.msra.mxu0 0.0
  %724 = vmatprep.subr.mxu0 0.0
  %725 = vmatpush2.msra.mxu0 0.0
  %726 = vmatprep.subr.mxu0 0.0
  %727 = vmatpush2.msra.mxu0 0.0
  %728 = vmatprep.subr.mxu0 0.0
  %729 = vmatpush2.msra.mxu0 0.0
  %730 = vmatprep.subr.mxu0 0.0
  %731 = vmatpush2.msra.mxu0 0.0
  %732 = vmatprep.subr.mxu0 0.0
  %733 = vmatpush2.msra.mxu0 0.0
  %734 = vmatprep.subr.mxu0 0.0
  %735 = vmatpush2.msra.mxu0 0.0
  %736 = vmatprep.subr.mxu0 0.0
  %737 = vmatpush2.msra.mxu0 0.0
  %738 = vmatprep.subr.mxu0 0.0
  %739 = vmatpush2.msra.mxu0 0.0
  %740 = vmatprep.subr.mxu0 0.0
  %741 = vmatpush2.msra.mxu0 0.0
  %742 = vmatprep.subr.mxu0 0.0
  %743 = vmatpush2.msra.mxu0 0.0
  %744 = vmatprep.subr.mxu0 0.0
  %745 = vmatpush2.msra.mxu0 0.0
  %746 = vmatprep.mubr.f32.mxu0 0.0
  %747 = vmatmul.mubr.f32.gmra.mxu0 %v671
  %v748 = vpop.f32.mrf.mxu0
  %v749 = vadd.f32 %v648, %v748
  %v750 = vpop.f32.mrf.mxu0
  %v751 = vadd.f32 %v650, %v750
  %752 = vmatprep.mubr.f32.mxu0 0.0
  %753 = vmatmul.mubr.f32.gmra.mxu0 %v674
  %v754 = vpop.f32.mrf.mxu0
  %v755 = vadd.f32 %v654, %v754
  %v756 = vpop.f32.mrf.mxu0
  %v757 = vadd.f32 %v656, %v756
  %758 = vmatprep.mubr.f32.mxu0 0.0
  %759 = vmatmul.mubr.f32.gmra.mxu0 %v677
  %v760 = vpop.f32.mrf.mxu0
  %v761 = vadd.f32 %v660, %v760
  %v762 = vpop.f32.mrf.mxu0
  %v763 = vadd.f32 %v662, %v762
  %764 = vmatprep.mubr.f32.mxu0 0.0
  %765 = vmatmul.mubr.f32.gmra.mxu0 %v680
  %v766 = vpop.f32.mrf.mxu0
  %v767 = vadd.f32 %v666, %v766
  %v768 = vpop.f32.mrf.mxu0
  %v769 = vadd.f32 %v668, %v768
  %770 = vdwg.mxu0
  %772 = vset.pattern.permute.xlu0 0
  %773 = vperm.xlu0 %772, %v64
  %v774 = vpop.permute.xlu0 %773
  %777 = vset.pattern.permute.xlu0 0
  %778 = vperm.xlu0 %777, %v65
  %v779 = vpop.permute.xlu0 %778
  %782 = vset.pattern.permute.xlu0 0
  %783 = vperm.xlu0 %782, %v66
  %v784 = vpop.permute.xlu0 %783
  %787 = vset.pattern.permute.xlu0 0
  %788 = vperm.xlu0 %787, %v67
  %v789 = vpop.permute.xlu0 %788
  %v791 = vadd.f32 %v749, %v774
  %v792 = vadd.f32 %v751, %v774
  %v793 = vadd.f32 %v755, %v779
  %v794 = vadd.f32 %v757, %v779
  %v795 = vadd.f32 %v761, %v784
  %v796 = vadd.f32 %v763, %v784
  %v797 = vadd.f32 %v767, %v789
  %v798 = vadd.f32 %v769, %v789
  %v799 = vmul.f32 %v791, 0.2
  %v800 = vmul.f32 %v792, 0.2
  %v801 = vmul.f32 %v793, 0.2
  %v802 = vmul.f32 %v794, 0.2
  %v803 = vmul.f32 %v795, 0.2
  %v804 = vmul.f32 %v796, 0.2
  %v805 = vmul.f32 %v797, 0.2
  %v806 = vmul.f32 %v798, 0.2
  %v807 = vmax.f32 %v791, %v799
  %v808 = vmax.f32 %v792, %v800
  %v809 = vmax.f32 %v793, %v801
  %v810 = vmax.f32 %v794, %v802
  %v811 = vmax.f32 %v795, %v803
  %v812 = vmax.f32 %v796, %v804
  %v813 = vmax.f32 %v797, %v805
  %v814 = vmax.f32 %v798, %v806
  %v815 = vld [vmem:[%s9] sm:$0x1]
  %v816 = vld [vmem:[#allocation2] sm:$0x1]
  %818 = vset.pattern.permute.xlu0 0
  %819 = vperm.xlu0 %818, %v816
  %v820 = vpop.permute.xlu0 %819
  %v822 = vlaneseq
  %v823 = vshrl.u32 %v822, 7
  %v824 = vsub.s32 0, %v823
  %v825 = vrot.slane %v820, %v824
  %v827 = vsel %vm568, %v815, 0
  %829 = vmatprep.subr.mxu0 0.0
  %830 = vmatpush1.msra.mxu0 0.0
  %831 = vmatprep.subr.mxu0 0.0
  %832 = vmatpush1.msra.mxu0 0.0
  %833 = vmatprep.subr.mxu0 0.0
  %834 = vmatpush1.msra.mxu0 0.0
  %835 = vmatprep.subr.mxu0 0.0
  %836 = vmatpush1.msra.mxu0 0.0
  %837 = vmatprep.subr.mxu0 0.0
  %838 = vmatpush1.msra.mxu0 0.0
  %839 = vmatprep.subr.mxu0 0.0
  %840 = vmatpush1.msra.mxu0 0.0
  %841 = vmatprep.subr.mxu0 0.0
  %842 = vmatpush1.msra.mxu0 0.0
  %843 = vmatprep.subr.mxu0 0.0
  %844 = vmatpush1.msra.mxu0 0.0
  %845 = vmatprep.subr.mxu0 0.0
  %846 = vmatpush1.msra.mxu0 0.0
  %847 = vmatprep.subr.mxu0 0.0
  %848 = vmatpush1.msra.mxu0 0.0
  %849 = vmatprep.subr.mxu0 0.0
  %850 = vmatpush1.msra.mxu0 0.0
  %851 = vmatprep.subr.mxu0 0.0
  %852 = vmatpush1.msra.mxu0 0.0
  %853 = vmatprep.subr.mxu0 %v814
  %854 = vmatpush1.msra.mxu0 %v813
  %855 = vmatprep.subr.mxu0 %v812
  %856 = vmatpush1.msra.mxu0 %v811
  %857 = vmatprep.subr.mxu0 %v810
  %858 = vmatpush1.msra.mxu0 %v809
  %859 = vmatprep.subr.mxu0 %v808
  %860 = vmatpush1.msra.mxu0 %v807
  %861 = vmatprep.subr.mxu0 0.0
  %862 = vmatpush2.msra.mxu0 0.0
  %863 = vmatprep.subr.mxu0 0.0
  %864 = vmatpush2.msra.mxu0 0.0
  %865 = vmatprep.subr.mxu0 0.0
  %866 = vmatpush2.msra.mxu0 0.0
  %867 = vmatprep.subr.mxu0 0.0
  %868 = vmatpush2.msra.mxu0 0.0
  %869 = vmatprep.subr.mxu0 0.0
  %870 = vmatpush2.msra.mxu0 0.0
  %871 = vmatprep.subr.mxu0 0.0
  %872 = vmatpush2.msra.mxu0 0.0
  %873 = vmatprep.subr.mxu0 0.0
  %874 = vmatpush2.msra.mxu0 0.0
  %875 = vmatprep.subr.mxu0 0.0
  %876 = vmatpush2.msra.mxu0 0.0
  %877 = vmatprep.subr.mxu0 0.0
  %878 = vmatpush2.msra.mxu0 0.0
  %879 = vmatprep.subr.mxu0 0.0
  %880 = vmatpush2.msra.mxu0 0.0
  %881 = vmatprep.subr.mxu0 0.0
  %882 = vmatpush2.msra.mxu0 0.0
  %883 = vmatprep.subr.mxu0 0.0
  %884 = vmatpush2.msra.mxu0 0.0
  %885 = vmatprep.subr.mxu0 0.0
  %886 = vmatpush2.msra.mxu0 0.0
  %887 = vmatprep.subr.mxu0 0.0
  %888 = vmatpush2.msra.mxu0 0.0
  %889 = vmatprep.subr.mxu0 0.0
  %890 = vmatpush2.msra.mxu0 0.0
  %891 = vmatprep.subr.mxu0 0.0
  %892 = vmatpush2.msra.mxu0 0.0
  %893 = vmatprep.mubr.f32.mxu0 0.0
  %894 = vmatmul.mubr.f32.gmra.mxu0 %v827
  %v895 = vpop.f32.mrf.mxu0
  %v896 = vadd.f32 %v825, %v895
  %v897 = vpop.f32.mrf.mxu0
  %v898 = vadd.f32 %v825, %v897
  %899 = vdwg.mxu0
  %v902 = vcombine.low %v896, %v898
  %v904 = vunpack.c.l.s4 1966171168
  %v905 = vunpack.c.0.s8 %v904
  %v906 = vlaneseq
  %v907 = vshrl.u32 %v906, 7
  %v908 = vsub.s32 %v905, %v907
  %v909 = vrot.slane %v902, %v908
  %v911 = vunpack.c.l.s4 1966171168
  %v912 = vunpack.c.0.s8 %v911
  %v913 = vlaneseq
  %v914 = vshrl.u32 %v913, 7
  %v915 = vsub.s32 %v912, %v914
  %v916 = vrot.slane %v909, %v915
  %v918 = vlaneseq
  %vm919 = vcmp.ge.s32.totalorder %v918, 0
  %vm920 = vcmp.lt.s32.totalorder %v918, 256
  %vm921 = vmand %vm919, %vm920
  %922 = vst.msk [vmem:[%s11] sm:$0x3] %vm921, %v916
  // Predicated region
  $region46: #{ffnn_forward.1} parent=0 // pred_check
    _
  $region47: #{ffnn_forward.1} parent=0 // pred_check_branch
    %924 = sbr.rel (0) target = $region49
  $region48: #{ffnn_forward.1} parent=0 // pred_region
    _
  $region49: #{ffnn_forward.1} parent=0 // pred_fallthru
    _
  // Predicated region
  $region50: #{ffnn_forward.1} parent=0 // pred_check
    _
  $region51: #{ffnn_forward.1} parent=0 // pred_check_branch
    %926 = sbr.rel (0) target = $region53
  $region52: #{ffnn_forward.1} parent=0 // pred_region
    _
  $region53: #{ffnn_forward.1} parent=0 // pred_fallthru
    _

</llo_original>
